<compile_context>
chip_gen: v5e
topology: v5e:2x2
jax: 0.10.0
libtpu: 0.0.40
codegen_flags: <defaults>
</compile_context>

<pallas_src>
import functools

import jax
import jax.numpy as jnp
from jax.experimental import pallas as pl
from jax.experimental.pallas import tpu as pltpu


def _round_up(x, m):
    return (x + m - 1) // m * m


def _meta_fc_kernel(e1_ref, e2_ref, w1_ref, b1_ref, w2_ref, b2_ref, out_ref,
                    *, d, mxu_dtype):
    """Fused |e1-e2| / e1*e2 feature build + 2-layer MLP head (one batch tile)."""
    e1 = e1_ref[...].astype(jnp.float32)
    e2 = e2_ref[...].astype(jnp.float32)

    # feature construction (elementwise, VPU)
    a_sub = jnp.abs(e1 - e2)          # (TB, D)
    mul_e = e1 * e2                   # (TB, D)

    # static in-kernel row split of W1 (d is a Python int, multiple of 8)
    w1a = w1_ref[:d, :]               # rows multiplying |e1 - e2|
    w1b = w1_ref[d:, :]               # rows multiplying e1 * e2

    if mxu_dtype is not None:         # optional narrow MXU feed (v6e/v7x)
        a_sub = a_sub.astype(mxu_dtype)
        mul_e = mul_e.astype(mxu_dtype)
        w1a = w1a.astype(mxu_dtype)
        w1b = w1b.astype(mxu_dtype)

    # first linear: concat(a_sub, mul_e) @ W1 + b1 == a_sub@W1a + mul_e@W1b + b1
    h = (jnp.dot(a_sub, w1a, preferred_element_type=jnp.float32)
         + jnp.dot(mul_e, w1b, preferred_element_type=jnp.float32)
         + b1_ref[...].astype(jnp.float32))          # (TB, H)
    h = jnp.maximum(h, 0.0)                          # ReLU

    # second linear, output padded to 128 lanes (lane-dense store)
    w2 = w2_ref[...]
    if mxu_dtype is not None:
        h = h.astype(mxu_dtype)
        w2 = w2.astype(mxu_dtype)
    out = (jnp.dot(h, w2, preferred_element_type=jnp.float32)
           + b2_ref[...].astype(jnp.float32))        # (TB, 128)
    out_ref[...] = out.astype(out_ref.dtype)


def prompteol_meta_asub_mul(e1, e2, w1, b1, w2, b2, *, block_b=256,
                            mxu_dtype=None):
    """JAX wrapper.

    e1, e2 : (B, D) last-token embeddings from the frozen encoder
    w1     : (2D, H)  b1: (H,)   -- nn.Linear(2D, 128)
    w2     : (H, O)   b2: (O,)   -- nn.Linear(128, 2)
    block_b: batch tile (multiple of 8). ~256 fits v7x's 64 MiB VMEM at D=2560 f32;
             512-1024 is fine on v5e/v6e (128 MiB).
    mxu_dtype: e.g. jnp.bfloat16 to feed the MXU narrow (f32 accumulation).
    """
    B, D = e1.shape
    H = w1.shape[1]
    O = w2.shape[1]
    assert w1.shape[0] == 2 * D and b1.shape == (H,) and b2.shape == (O,)
    assert D % 8 == 0, "feature dim must be a multiple of 8 for the static W1 split"

    # --- batch tiling -------------------------------------------------------
    if B <= block_b:
        TB = B                       # full-extent block, no padding needed
        B_pad = B
    else:
        TB = _round_up(block_b, 8)
        B_pad = _round_up(B, TB)
        if B_pad != B:
            pad = B_pad - B
            e1 = jnp.pad(e1, ((0, pad), (0, 0)))
            e2 = jnp.pad(e2, ((0, pad), (0, 0)))
    grid = (B_pad // TB,)

    # --- lane-dense output: pad second layer from O -> OP (=128) columns ----
    OP = max(_round_up(O, 128), 128)
    w2_p = jnp.zeros((H, OP), dtype=w2.dtype).at[:, :O].set(w2)
    b2_p = jnp.zeros((1, OP), dtype=b2.dtype).at[:, :O].set(b2)
    b1_2d = b1.reshape(1, H)

    # --- VMEM budget (conservative over-estimate, with headroom) ------------
    isz_e = jnp.dtype(e1.dtype).itemsize
    isz_w = jnp.dtype(w1.dtype).itemsize
    est = (2 * 2 * TB * D * isz_e                      # double-buffered e1/e2 tiles
           + 2 * TB * OP * 4                           # double-buffered output tile
           + 2 * (2 * D * H + H + H * OP + OP) * isz_w # resident weights/biases
           + 4 * TB * max(D, H) * 4)                   # a_sub / mul_e / h / slack
    vmem_limit = int(min(max(2 * est, 16 << 20), 56 << 20))

    flops = 2 * B_pad * (2 * D) * H + 2 * B_pad * H * OP
    bytes_accessed = ((2 * B_pad * D) * isz_e
                      + (2 * D * H + H + H * OP + OP) * isz_w
                      + B_pad * OP * 4)

    kernel = functools.partial(_meta_fc_kernel, d=D, mxu_dtype=mxu_dtype)

    out_padded = pl.pallas_call(
        kernel,
        out_shape=jax.ShapeDtypeStruct((B_pad, OP), jnp.float32),
        grid=grid,
        in_specs=[
            pl.BlockSpec((TB, D), lambda i: (i, 0)),        # e1 tile
            pl.BlockSpec((TB, D), lambda i: (i, 0)),        # e2 tile
            pl.BlockSpec((2 * D, H), lambda i: (0, 0)),     # W1 (resident)
            pl.BlockSpec((1, H), lambda i: (0, 0)),         # b1 (resident)
            pl.BlockSpec((H, OP), lambda i: (0, 0)),        # W2 padded (resident)
            pl.BlockSpec((1, OP), lambda i: (0, 0)),        # b2 padded (resident)
        ],
        out_specs=pl.BlockSpec((TB, OP), lambda i: (i, 0)),
        compiler_params=pltpu.CompilerParams(
            dimension_semantics=("parallel",),
            vmem_limit_bytes=vmem_limit,
        ),
        cost_estimate=pl.CostEstimate(
            flops=flops, transcendentals=0, bytes_accessed=bytes_accessed),
    )(e1, e2, w1, b1_2d, w2_p, b2_p)

    return out_padded[:B, :O]


def reference(e1, e2, w1, b1, w2, b2):
    a_sub = jnp.abs(e1 - e2)
    mul_e = e1 * e2
    combined = jnp.concatenate([a_sub, mul_e], axis=1)
    h = jnp.maximum(combined @ w1 + b1, 0.0)
    return h @ w2 + b2


if __name__ == "__main__":
    # small shapes consistent with the module's forward:
    #   batch=2, embedding dim D=256 (stand-in for peft_model_out_dim=2560),
    #   meta_fc hidden=128, output=2.
    B, D, H, O = 2, 256, 128, 2

    key = jax.random.PRNGKey(0)
    k_e1, k_e2, k_w1, k_b1, k_w2, k_b2 = jax.random.split(key, 6)

    # deterministic "embeddings" standing in for the frozen LLM outputs
    e1 = jax.random.normal(k_e1, (B, D), dtype=jnp.float32)
    e2 = jax.random.normal(k_e2, (B, D), dtype=jnp.float32)

    # deterministic meta_fc parameters (nn.Linear(2D,128), nn.Linear(128,2))
    w1 = jax.random.normal(k_w1, (2 * D, H), dtype=jnp.float32) * 0.02
    b1 = jax.random.normal(k_b1, (H,), dtype=jnp.float32) * 0.02
    w2 = jax.random.normal(k_w2, (H, O), dtype=jnp.float32) * 0.02
    b2 = jax.random.normal(k_b2, (O,), dtype=jnp.float32) * 0.02

    # 1) tiny batch (single grid step, full-extent batch block)
    out = prompteol_meta_asub_mul(e1, e2, w1, b1, w2, b2)
    out = jax.block_until_ready(out)
    ref = reference(e1, e2, w1, b1, w2, b2)
    assert out.shape == (B, O)
    assert jnp.allclose(out, ref, atol=1e-4, rtol=1e-4), (out, ref)

    # 2) larger (non-divisible) batch exercising the grid + padding path
    B2 = 50
    e1b = jax.random.normal(jax.random.PRNGKey(1), (B2, D), dtype=jnp.float32)
    e2b = jax.random.normal(jax.random.PRNGKey(2), (B2, D), dtype=jnp.float32)
    out2 = prompteol_meta_asub_mul(e1b, e2b, w1, b1, w2, b2, block_b=16)
    out2 = jax.block_until_ready(out2)
    ref2 = reference(e1b, e2b, w1, b1, w2, b2)
    assert out2.shape == (B2, O)
    assert jnp.allclose(out2, ref2, atol=1e-4, rtol=1e-4)

    print("KERNEL_OK")
</pallas_src>

<mosaic_0001>
module attributes {stable_mosaic.version = 11 : i64} {
  func.func @_meta_fc_kernel(%arg0: i32, %arg1: memref<2x256xf32, #tpu.memory_space<vmem>>, %arg2: memref<2x256xf32, #tpu.memory_space<vmem>>, %arg3: memref<512x128xf32, #tpu.memory_space<vmem>>, %arg4: memref<1x128xf32, #tpu.memory_space<vmem>>, %arg5: memref<128x128xf32, #tpu.memory_space<vmem>>, %arg6: memref<1x128xf32, #tpu.memory_space<vmem>>, %arg7: memref<2x128xf32, #tpu.memory_space<vmem>>) attributes {dimension_semantics = [#tpu.dimension_semantics<parallel>], iteration_bounds = array<i64: 1>, scalar_prefetch = 0 : i64, scratch_operands = 0 : i64, tpu.core_type = #tpu.core_type<tc>, window_params = [{transform_indices = @transform_0, window_bounds = array<i64: 2, 256>}, {transform_indices = @transform_1, window_bounds = array<i64: 2, 256>}, {pipeline_mode = #tpu.pipeline_mode<synchronous>, transform_indices = @transform_2, window_bounds = array<i64: 512, 128>}, {pipeline_mode = #tpu.pipeline_mode<synchronous>, transform_indices = @transform_3, window_bounds = array<i64: 1, 128>}, {pipeline_mode = #tpu.pipeline_mode<synchronous>, transform_indices = @transform_4, window_bounds = array<i64: 128, 128>}, {pipeline_mode = #tpu.pipeline_mode<synchronous>, transform_indices = @transform_5, window_bounds = array<i64: 1, 128>}, {transform_indices = @transform_6, window_bounds = array<i64: 2, 128>}]} {
    %c0 = arith.constant 0 : index
    %c0_0 = arith.constant 0 : index
    %0 = vector.load %arg1[%c0, %c0_0] : memref<2x256xf32, #tpu.memory_space<vmem>>, vector<2x256xf32>
    %c0_1 = arith.constant 0 : index
    %c0_2 = arith.constant 0 : index
    %1 = vector.load %arg2[%c0_1, %c0_2] : memref<2x256xf32, #tpu.memory_space<vmem>>, vector<2x256xf32>
    %2 = arith.subf %0, %1 : vector<2x256xf32>
    %3 = math.absf %2 : vector<2x256xf32>
    %4 = arith.mulf %0, %1 : vector<2x256xf32>
    %c0_3 = arith.constant 0 : index
    %c0_4 = arith.constant 0 : index
    %5 = vector.load %arg3[%c0_3, %c0_4] : memref<512x128xf32, #tpu.memory_space<vmem>>, vector<256x128xf32>
    %c256 = arith.constant 256 : index
    %c0_5 = arith.constant 0 : index
    %6 = vector.load %arg3[%c256, %c0_5] : memref<512x128xf32, #tpu.memory_space<vmem>>, vector<256x128xf32>
    %cst = arith.constant dense<0.000000e+00> : vector<2x128xf32>
    %7 = tpu.matmul %3, %5, %cst {dimension_numbers = #tpu.dot_dimension_numbers<[1], [0], [0], [1], [0, 0, 1, 1], [], []>} : vector<2x256xf32>, vector<256x128xf32>, vector<2x128xf32> -> vector<2x128xf32>
    %cst_6 = arith.constant dense<0.000000e+00> : vector<2x128xf32>
    %8 = tpu.matmul %4, %6, %cst_6 {dimension_numbers = #tpu.dot_dimension_numbers<[1], [0], [0], [1], [0, 0, 1, 1], [], []>} : vector<2x256xf32>, vector<256x128xf32>, vector<2x128xf32> -> vector<2x128xf32>
    %9 = arith.addf %7, %8 : vector<2x128xf32>
    %c0_7 = arith.constant 0 : index
    %c0_8 = arith.constant 0 : index
    %10 = vector.load %arg4[%c0_7, %c0_8] : memref<1x128xf32, #tpu.memory_space<vmem>>, vector<1x128xf32>
    %11 = vector.broadcast %10 : vector<1x128xf32> to vector<2x128xf32>
    %12 = arith.addf %9, %11 : vector<2x128xf32>
    %cst_9 = arith.constant 0.000000e+00 : f32
    %13 = vector.broadcast %cst_9 : f32 to vector<2x128xf32>
    %14 = arith.maximumf %12, %13 : vector<2x128xf32>
    %c0_10 = arith.constant 0 : index
    %c0_11 = arith.constant 0 : index
    %15 = vector.load %arg5[%c0_10, %c0_11] : memref<128x128xf32, #tpu.memory_space<vmem>>, vector<128x128xf32>
    %cst_12 = arith.constant dense<0.000000e+00> : vector<2x128xf32>
    %16 = tpu.matmul %14, %15, %cst_12 {dimension_numbers = #tpu.dot_dimension_numbers<[1], [0], [0], [1], [0, 0, 1, 1], [], []>} : vector<2x128xf32>, vector<128x128xf32>, vector<2x128xf32> -> vector<2x128xf32>
    %c0_13 = arith.constant 0 : index
    %c0_14 = arith.constant 0 : index
    %17 = vector.load %arg6[%c0_13, %c0_14] : memref<1x128xf32, #tpu.memory_space<vmem>>, vector<1x128xf32>
    %18 = vector.broadcast %17 : vector<1x128xf32> to vector<2x128xf32>
    %19 = arith.addf %16, %18 : vector<2x128xf32>
    %c0_15 = arith.constant 0 : index
    %c0_16 = arith.constant 0 : index
    %20 = vector.load %arg7[%c0_15, %c0_16] : memref<2x128xf32, #tpu.memory_space<vmem>>, vector<2x128xf32>
    tpu.vector_store %arg7[%c0_15, %c0_16], %19 {strides = array<i32>} : memref<2x128xf32, #tpu.memory_space<vmem>>, vector<2x128xf32>,
    return
  }
  func.func @transform_0(%arg0: i32) -> (i32, i32) {
    %c0_i32 = arith.constant 0 : i32
    %c0_i32_0 = arith.constant 0 : i32
    return %arg0, %c0_i32 : i32, i32
  }
  func.func @transform_1(%arg0: i32) -> (i32, i32) {
    %c0_i32 = arith.constant 0 : i32
    %c0_i32_0 = arith.constant 0 : i32
    return %arg0, %c0_i32 : i32, i32
  }
  func.func @transform_2(%arg0: i32) -> (i32, i32) {
    %c0_i32 = arith.constant 0 : i32
    %c0_i32_0 = arith.constant 0 : i32
    %c0_i32_1 = arith.constant 0 : i32
    return %c0_i32, %c0_i32_0 : i32, i32
  }
  func.func @transform_3(%arg0: i32) -> (i32, i32) {
    %c0_i32 = arith.constant 0 : i32
    %c0_i32_0 = arith.constant 0 : i32
    %c0_i32_1 = arith.constant 0 : i32
    return %c0_i32, %c0_i32_0 : i32, i32
  }
  func.func @transform_4(%arg0: i32) -> (i32, i32) {
    %c0_i32 = arith.constant 0 : i32
    %c0_i32_0 = arith.constant 0 : i32
    %c0_i32_1 = arith.constant 0 : i32
    return %c0_i32, %c0_i32_0 : i32, i32
  }
  func.func @transform_5(%arg0: i32) -> (i32, i32) {
    %c0_i32 = arith.constant 0 : i32
    %c0_i32_0 = arith.constant 0 : i32
    %c0_i32_1 = arith.constant 0 : i32
    return %c0_i32, %c0_i32_0 : i32, i32
  }
  func.func @transform_6(%arg0: i32) -> (i32, i32) {
    %c0_i32 = arith.constant 0 : i32
    %c0_i32_0 = arith.constant 0 : i32
    return %arg0, %c0_i32 : i32, i32
  }
}

</mosaic_0001>

<llo_original>
// kernel: tpu_custom_call.1
$region0: #{tpu_custom_call.1}
  #allocation0 [shape = 'u32[]', space=smem, size = 0x4, offset = 0x4, fixed_abs, tag = 'smem constant byte address 0x4 - core index']
  #allocation1 [shape = 'u32[72,128]{1,0:T(1,128)}', space=vmem, size = 0x9000, scoped, tag = 'internal scratch']
  %s0 = inlined_call_operand.hbm [shape: f32[2,256], index: 0, kind: input, shape index: {}]
  %s1 = inlined_call_operand.hbm [shape: f32[2,256], index: 1, kind: input, shape index: {}]
  %s2 = inlined_call_operand.hbm [shape: f32[512,128], index: 2, kind: input, shape index: {}]
  %s3 = inlined_call_operand.vmem [shape: f32[1,128], index: 3, kind: input, shape index: {}]
  %s4 = inlined_call_operand.hbm [shape: f32[128,128], index: 4, kind: input, shape index: {}]
  %s5 = inlined_call_operand.vmem [shape: f32[1,128], index: 5, kind: input, shape index: {}]
  %s6 = inlined_call_operand.hbm [shape: f32[2,128], index: 6, kind: output, shape index: {}]
  %s7 = sld [smem:[#allocation0]]
  $region50: #{tpu_custom_call.1} parent=0
    _
  %s9 = ssub.s32 1, %s7
  %s10 = scalar_select 0, %s9, %s7
  $region1: #{tpu_custom_call.1} parent=0
    #allocation2 [shape = 'u8[2048]{0}', space=vmem, size = 0x800, scoped, tag = 'input window, operand 0, single buffered']
    #allocation3 [shape = 's32[1]{0}', space=sflag, size = 0x4, scoped, tag = 'scoped memory for tpu_custom_call.1']
    #allocation4 [shape = 's32[1]{0}', space=sflag, size = 0x4, scoped, tag = 'scoped memory for tpu_custom_call.1']
    #allocation5 [shape = 'u8[2048]{0}', space=vmem, size = 0x800, scoped, tag = 'input window, operand 1, single buffered']
    #allocation6 [shape = 's32[1]{0}', space=sflag, size = 0x4, scoped, tag = 'scoped memory for tpu_custom_call.1']
    #allocation7 [shape = 'u8[262144]{0}', space=vmem, size = 0x40000, scoped, tag = 'input window, operand 2, single buffered']
    #allocation8 [shape = 'u8[65536]{0}', space=vmem, size = 0x10000, scoped, tag = 'input window, operand 4, single buffered']
    #allocation9 [shape = 's32[1]{0}', space=sflag, size = 0x4, scoped, tag = 'scoped memory for tpu_custom_call.1']
    #allocation10 [shape = 'u8[1024]{0}', space=vmem, size = 0x400, scoped, tag = 'output window, operand 0, single buffered']
    %11 = vsyncpa [#allocation3], 0
    %12 = vsyncpa [#allocation6], 0
    %13 = vsyncpa [#allocation9], 0
    %14 = vsyncpa [#allocation4], 0
    // Predicated region
    $region2: #{tpu_custom_call.1} parent=1 // pred_check
      _
    $region3: #{tpu_custom_call.1} parent=1 // pred_check_branch
      %16 = sbr.rel (0) target = $region5
    $region4: #{tpu_custom_call.1} parent=1 // pred_region
      %18 = vsyncadd [#allocation3], 0
      %s20 = sshll.u32 %s0, 4
      %s21 = int_to_ptr.hbm [resolvable:$true] %s20
      %s22 = sshll.u32 [#allocation2], 4
      %s23 = int_to_ptr.vmem [resolvable:$true] %s22
      %25 = dma.hbm_to_vmem [thread:$0]  %s21, 64, %s23, [#allocation3]
    $region5: #{tpu_custom_call.1} parent=1 // pred_fallthru
      _
    // Predicated region
    $region6: #{tpu_custom_call.1} parent=1 // pred_check
      _
    $region7: #{tpu_custom_call.1} parent=1 // pred_check_branch
      %27 = sbr.rel (0) target = $region9
    $region8: #{tpu_custom_call.1} parent=1 // pred_region
      %29 = vsyncadd [#allocation6], 0
      %s31 = sshll.u32 %s1, 4
      %s32 = int_to_ptr.hbm [resolvable:$true] %s31
      %s33 = sshll.u32 [#allocation5], 4
      %s34 = int_to_ptr.vmem [resolvable:$true] %s33
      %36 = dma.hbm_to_vmem [thread:$0]  %s32, 64, %s34, [#allocation6]
    $region9: #{tpu_custom_call.1} parent=1 // pred_fallthru
      _
    // Predicated region
    $region10: #{tpu_custom_call.1} parent=1 // pred_check
      _
    $region11: #{tpu_custom_call.1} parent=1 // pred_check_branch
      %38 = sbr.rel (0) target = $region13
    $region12: #{tpu_custom_call.1} parent=1 // pred_region
      %40 = vsyncadd [#allocation6], 0
      %s41 = sshll.u32 %s2, 4
      %s42 = int_to_ptr.hbm [resolvable:$true] %s41
      %s43 = sshll.u32 [#allocation7], 4
      %s44 = int_to_ptr.vmem [resolvable:$true] %s43
      %49 = dma.hbm_to_vmem [thread:$0]  %s42, 8192, %s44, [#allocation6], 128, 128, 8
    $region13: #{tpu_custom_call.1} parent=1 // pred_fallthru
      _
    // Predicated region
    $region14: #{tpu_custom_call.1} parent=1 // pred_check
      _
    $region15: #{tpu_custom_call.1} parent=1 // pred_check_branch
      %51 = sbr.rel (0) target = $region17
    $region16: #{tpu_custom_call.1} parent=1 // pred_region
      _
    $region17: #{tpu_custom_call.1} parent=1 // pred_fallthru
      _
    // Predicated region
    $region18: #{tpu_custom_call.1} parent=1 // pred_check
      _
    $region19: #{tpu_custom_call.1} parent=1 // pred_check_branch
      %53 = sbr.rel (0) target = $region21
    $region20: #{tpu_custom_call.1} parent=1 // pred_region
      %55 = vsyncadd [#allocation9], 0
      %s56 = sshll.u32 %s4, 4
      %s57 = int_to_ptr.hbm [resolvable:$true] %s56
      %s58 = sshll.u32 [#allocation8], 4
      %s59 = int_to_ptr.vmem [resolvable:$true] %s58
      %64 = dma.hbm_to_vmem [thread:$0]  %s57, 2048, %s59, [#allocation9], 128, 128, 8
    $region21: #{tpu_custom_call.1} parent=1 // pred_fallthru
      _
    // Predicated region
    $region22: #{tpu_custom_call.1} parent=1 // pred_check
      _
    $region23: #{tpu_custom_call.1} parent=1 // pred_check_branch
      %66 = sbr.rel (0) target = $region25
    $region24: #{tpu_custom_call.1} parent=1 // pred_region
      _
    $region25: #{tpu_custom_call.1} parent=1 // pred_fallthru
      _
    // Predicated region
    $region26: #{tpu_custom_call.1} parent=1 // pred_check
      _
    $region27: #{tpu_custom_call.1} parent=1 // pred_check_branch
      %68 = sbr.rel (0) target = $region29
    $region28: #{tpu_custom_call.1} parent=1 // pred_region
      %70 = dma.done [#allocation3], 64
    $region29: #{tpu_custom_call.1} parent=1 // pred_fallthru
      _
    // Predicated region
    $region30: #{tpu_custom_call.1} parent=1 // pred_check
      _
    $region31: #{tpu_custom_call.1} parent=1 // pred_check_branch
      %72 = sbr.rel (0) target = $region33
    $region32: #{tpu_custom_call.1} parent=1 // pred_region
      %74 = dma.done [#allocation6], 64
    $region33: #{tpu_custom_call.1} parent=1 // pred_fallthru
      _
    // Predicated region
    $region34: #{tpu_custom_call.1} parent=1 // pred_check
      _
    $region35: #{tpu_custom_call.1} parent=1 // pred_check_branch
      %76 = sbr.rel (0) target = $region37
    $region36: #{tpu_custom_call.1} parent=1 // pred_region
      %78 = dma.done [#allocation6], 8192
    $region37: #{tpu_custom_call.1} parent=1 // pred_fallthru
      _
    // Predicated region
    $region38: #{tpu_custom_call.1} parent=1 // pred_check
      _
    $region39: #{tpu_custom_call.1} parent=1 // pred_check_branch
      %80 = sbr.rel (0) target = $region41
    $region40: #{tpu_custom_call.1} parent=1 // pred_region
      %82 = dma.done [#allocation9], 2048
    $region41: #{tpu_custom_call.1} parent=1 // pred_fallthru
      _
    %v83 = vld [vmem:[#allocation2] sm:$0xf]
    %v84 = vld [vmem:[#allocation5] sm:$0xf]
    %v85 = vsub.f32 %v83, %v84
    %v86 = vand.u32 2147483647, %v85
    %v87 = vmul.f32 %v83, %v84
    %v88 = vld [vmem:[#allocation7] sm:$0xff]
    %v89 = vld [vmem:[#allocation7 + $0x8] sm:$0xff]
    %v90 = vld [vmem:[#allocation7 + $0x10] sm:$0xff]
    %v91 = vld [vmem:[#allocation7 + $0x18] sm:$0xff]
    %v92 = vld [vmem:[#allocation7 + $0x20] sm:$0xff]
    %v93 = vld [vmem:[#allocation7 + $0x28] sm:$0xff]
    %v94 = vld [vmem:[#allocation7 + $0x30] sm:$0xff]
    %v95 = vld [vmem:[#allocation7 + $0x38] sm:$0xff]
    %v96 = vld [vmem:[#allocation7 + $0x40] sm:$0xff]
    %v97 = vld [vmem:[#allocation7 + $0x48] sm:$0xff]
    %v98 = vld [vmem:[#allocation7 + $0x50] sm:$0xff]
    %v99 = vld [vmem:[#allocation7 + $0x58] sm:$0xff]
    %v100 = vld [vmem:[#allocation7 + $0x60] sm:$0xff]
    %v101 = vld [vmem:[#allocation7 + $0x68] sm:$0xff]
    %v102 = vld [vmem:[#allocation7 + $0x70] sm:$0xff]
    %v103 = vld [vmem:[#allocation7 + $0x78] sm:$0xff]
    %v104 = vld [vmem:[#allocation7 + $0x80] sm:$0xff]
    %v105 = vld [vmem:[#allocation7 + $0x88] sm:$0xff]
    %v106 = vld [vmem:[#allocation7 + $0x90] sm:$0xff]
    %v107 = vld [vmem:[#allocation7 + $0x98] sm:$0xff]
    %v108 = vld [vmem:[#allocation7 + $0xa0] sm:$0xff]
    %v109 = vld [vmem:[#allocation7 + $0xa8] sm:$0xff]
    %v110 = vld [vmem:[#allocation7 + $0xb0] sm:$0xff]
    %v111 = vld [vmem:[#allocation7 + $0xb8] sm:$0xff]
    %v112 = vld [vmem:[#allocation7 + $0xc0] sm:$0xff]
    %v113 = vld [vmem:[#allocation7 + $0xc8] sm:$0xff]
    %v114 = vld [vmem:[#allocation7 + $0xd0] sm:$0xff]
    %v115 = vld [vmem:[#allocation7 + $0xd8] sm:$0xff]
    %v116 = vld [vmem:[#allocation7 + $0xe0] sm:$0xff]
    %v117 = vld [vmem:[#allocation7 + $0xe8] sm:$0xff]
    %v118 = vld [vmem:[#allocation7 + $0xf0] sm:$0xff]
    %v119 = vld [vmem:[#allocation7 + $0xf8] sm:$0xff]
    %v120 = vld [vmem:[#allocation7 + $0x100] sm:$0xff]
    %v121 = vld [vmem:[#allocation7 + $0x108] sm:$0xff]
    %v122 = vld [vmem:[#allocation7 + $0x110] sm:$0xff]
    %v123 = vld [vmem:[#allocation7 + $0x118] sm:$0xff]
    %v124 = vld [vmem:[#allocation7 + $0x120] sm:$0xff]
    %v125 = vld [vmem:[#allocation7 + $0x128] sm:$0xff]
    %v126 = vld [vmem:[#allocation7 + $0x130] sm:$0xff]
    %v127 = vld [vmem:[#allocation7 + $0x138] sm:$0xff]
    %v128 = vld [vmem:[#allocation7 + $0x140] sm:$0xff]
    %v129 = vld [vmem:[#allocation7 + $0x148] sm:$0xff]
    %v130 = vld [vmem:[#allocation7 + $0x150] sm:$0xff]
    %v131 = vld [vmem:[#allocation7 + $0x158] sm:$0xff]
    %v132 = vld [vmem:[#allocation7 + $0x160] sm:$0xff]
    %v133 = vld [vmem:[#allocation7 + $0x168] sm:$0xff]
    %v134 = vld [vmem:[#allocation7 + $0x170] sm:$0xff]
    %v135 = vld [vmem:[#allocation7 + $0x178] sm:$0xff]
    %v136 = vld [vmem:[#allocation7 + $0x180] sm:$0xff]
    %v137 = vld [vmem:[#allocation7 + $0x188] sm:$0xff]
    %v138 = vld [vmem:[#allocation7 + $0x190] sm:$0xff]
    %v139 = vld [vmem:[#allocation7 + $0x198] sm:$0xff]
    %v140 = vld [vmem:[#allocation7 + $0x1a0] sm:$0xff]
    %v141 = vld [vmem:[#allocation7 + $0x1a8] sm:$0xff]
    %v142 = vld [vmem:[#allocation7 + $0x1b0] sm:$0xff]
    %v143 = vld [vmem:[#allocation7 + $0x1b8] sm:$0xff]
    %v144 = vld [vmem:[#allocation7 + $0x1c0] sm:$0xff]
    %v145 = vld [vmem:[#allocation7 + $0x1c8] sm:$0xff]
    %v146 = vld [vmem:[#allocation7 + $0x1d0] sm:$0xff]
    %v147 = vld [vmem:[#allocation7 + $0x1d8] sm:$0xff]
    %v148 = vld [vmem:[#allocation7 + $0x1e0] sm:$0xff]
    %v149 = vld [vmem:[#allocation7 + $0x1e8] sm:$0xff]
    %v150 = vld [vmem:[#allocation7 + $0x1f0] sm:$0xff]
    %v151 = vld [vmem:[#allocation7 + $0x1f8] sm:$0xff]
    %153 = vst [vmem:[#allocation1] ss:$4 sm:$0xff] %v87
    %v154 = vld.sshfl [vmem:[#allocation1] sm:$0xff pattern:$0x73625140]
    %v155 = vld.sshfl [vmem:[#allocation1 + $0x8] sm:$0xff pattern:$0x73625140]
    %158 = vmatpush.msra.mxu0 %v135
    %159 = vmatpush.msra.mxu0 %v134
    %160 = vmatpush.msra.mxu0 %v133
    %161 = vmatpush.msra.mxu0 %v132
    %162 = vmatpush.msra.mxu0 %v131
    %163 = vmatpush.msra.mxu0 %v130
    %164 = vmatpush.msra.mxu0 %v129
    %165 = vmatpush.msra.mxu0 %v128
    %166 = vmatpush.msra.mxu0 %v127
    %167 = vmatpush.msra.mxu0 %v126
    %168 = vmatpush.msra.mxu0 %v125
    %169 = vmatpush.msra.mxu0 %v124
    %170 = vmatpush.msra.mxu0 %v123
    %171 = vmatpush.msra.mxu0 %v122
    %172 = vmatpush.msra.mxu0 %v121
    %173 = vmatpush.msra.mxu0 %v120
    %174 = vmatmul.f32.gmra.mxu0 %v154
    %v175 = vpop.f32.mrf.mxu0
    %v176 = vadd.f32 0.0, %v175
    %177 = vdwg.mxu0
    %178 = vmatpush.msra.mxu0 %v151
    %179 = vmatpush.msra.mxu0 %v150
    %180 = vmatpush.msra.mxu0 %v149
    %181 = vmatpush.msra.mxu0 %v148
    %182 = vmatpush.msra.mxu0 %v147
    %183 = vmatpush.msra.mxu0 %v146
    %184 = vmatpush.msra.mxu0 %v145
    %185 = vmatpush.msra.mxu0 %v144
    %186 = vmatpush.msra.mxu0 %v143
    %187 = vmatpush.msra.mxu0 %v142
    %188 = vmatpush.msra.mxu0 %v141
    %189 = vmatpush.msra.mxu0 %v140
    %190 = vmatpush.msra.mxu0 %v139
    %191 = vmatpush.msra.mxu0 %v138
    %192 = vmatpush.msra.mxu0 %v137
    %193 = vmatpush.msra.mxu0 %v136
    %194 = vmatmul.f32.gmra.mxu0 %v155
    %v195 = vpop.f32.mrf.mxu0
    %v196 = vadd.f32 %v176, %v195
    %197 = vdwg.mxu0
    %199 = vst [vmem:[#allocation1] ss:$4 sm:$0xff] %v86
    %v200 = vld.sshfl [vmem:[#allocation1] sm:$0xff pattern:$0x73625140]
    %v201 = vld.sshfl [vmem:[#allocation1 + $0x8] sm:$0xff pattern:$0x73625140]
    %204 = vmatpush.msra.mxu0 %v103
    %205 = vmatpush.msra.mxu0 %v102
    %206 = vmatpush.msra.mxu0 %v101
    %207 = vmatpush.msra.mxu0 %v100
    %208 = vmatpush.msra.mxu0 %v99
    %209 = vmatpush.msra.mxu0 %v98
    %210 = vmatpush.msra.mxu0 %v97
    %211 = vmatpush.msra.mxu0 %v96
    %212 = vmatpush.msra.mxu0 %v95
    %213 = vmatpush.msra.mxu0 %v94
    %214 = vmatpush.msra.mxu0 %v93
    %215 = vmatpush.msra.mxu0 %v92
    %216 = vmatpush.msra.mxu0 %v91
    %217 = vmatpush.msra.mxu0 %v90
    %218 = vmatpush.msra.mxu0 %v89
    %219 = vmatpush.msra.mxu0 %v88
    %220 = vmatmul.f32.gmra.mxu0 %v200
    %v221 = vpop.f32.mrf.mxu0
    %v222 = vadd.f32 %v196, %v221
    %223 = vdwg.mxu0
    %224 = vmatpush.msra.mxu0 %v119
    %225 = vmatpush.msra.mxu0 %v118
    %226 = vmatpush.msra.mxu0 %v117
    %227 = vmatpush.msra.mxu0 %v116
    %228 = vmatpush.msra.mxu0 %v115
    %229 = vmatpush.msra.mxu0 %v114
    %230 = vmatpush.msra.mxu0 %v113
    %231 = vmatpush.msra.mxu0 %v112
    %232 = vmatpush.msra.mxu0 %v111
    %233 = vmatpush.msra.mxu0 %v110
    %234 = vmatpush.msra.mxu0 %v109
    %235 = vmatpush.msra.mxu0 %v108
    %236 = vmatpush.msra.mxu0 %v107
    %237 = vmatpush.msra.mxu0 %v106
    %238 = vmatpush.msra.mxu0 %v105
    %239 = vmatpush.msra.mxu0 %v104
    %240 = vmatmul.f32.gmra.mxu0 %v201
    %v241 = vpop.f32.mrf.mxu0
    %v242 = vadd.f32 %v222, %v241
    %243 = vdwg.mxu0
    %v244 = vld [vmem:[%s3] sm:$0x1]
    %v246 = vperm.slane %v244, 0
    %v248 = vadd.f32 %v242, %v246
    %v249 = vmax.f32 %v248, 0.0
    %v250 = vld [vmem:[#allocation8] sm:$0xff]
    %v251 = vld [vmem:[#allocation8 + $0x8] sm:$0xff]
    %v252 = vld [vmem:[#allocation8 + $0x10] sm:$0xff]
    %v253 = vld [vmem:[#allocation8 + $0x18] sm:$0xff]
    %v254 = vld [vmem:[#allocation8 + $0x20] sm:$0xff]
    %v255 = vld [vmem:[#allocation8 + $0x28] sm:$0xff]
    %v256 = vld [vmem:[#allocation8 + $0x30] sm:$0xff]
    %v257 = vld [vmem:[#allocation8 + $0x38] sm:$0xff]
    %v258 = vld [vmem:[#allocation8 + $0x40] sm:$0xff]
    %v259 = vld [vmem:[#allocation8 + $0x48] sm:$0xff]
    %v260 = vld [vmem:[#allocation8 + $0x50] sm:$0xff]
    %v261 = vld [vmem:[#allocation8 + $0x58] sm:$0xff]
    %v262 = vld [vmem:[#allocation8 + $0x60] sm:$0xff]
    %v263 = vld [vmem:[#allocation8 + $0x68] sm:$0xff]
    %v264 = vld [vmem:[#allocation8 + $0x70] sm:$0xff]
    %v265 = vld [vmem:[#allocation8 + $0x78] sm:$0xff]
    %v266 = vld [vmem:[%s5] sm:$0x1]
    %v268 = vperm.slane %v266, 0
    %270 = vmatpush.msra.mxu0 %v265
    %271 = vmatpush.msra.mxu0 %v264
    %272 = vmatpush.msra.mxu0 %v263
    %273 = vmatpush.msra.mxu0 %v262
    %274 = vmatpush.msra.mxu0 %v261
    %275 = vmatpush.msra.mxu0 %v260
    %276 = vmatpush.msra.mxu0 %v259
    %277 = vmatpush.msra.mxu0 %v258
    %278 = vmatpush.msra.mxu0 %v257
    %279 = vmatpush.msra.mxu0 %v256
    %280 = vmatpush.msra.mxu0 %v255
    %281 = vmatpush.msra.mxu0 %v254
    %282 = vmatpush.msra.mxu0 %v253
    %283 = vmatpush.msra.mxu0 %v252
    %284 = vmatpush.msra.mxu0 %v251
    %285 = vmatpush.msra.mxu0 %v250
    %286 = vmatmul.f32.gmra.mxu0 %v249
    %v287 = vpop.f32.mrf.mxu0
    %v288 = vadd.f32 %v268, %v287
    %289 = vdwg.mxu0
    %290 = vst [vmem:[#allocation10] sm:$0x3] %v288
    // Predicated region
    $region42: #{tpu_custom_call.1} parent=1 // pred_check
      _
    $region43: #{tpu_custom_call.1} parent=1 // pred_check_branch
      %292 = sbr.rel (0) target = $region45
    $region44: #{tpu_custom_call.1} parent=1 // pred_region
      %294 = vsyncadd [#allocation4], 0
      %s296 = sshll.u32 [#allocation10], 4
      %s297 = int_to_ptr.vmem [resolvable:$true] %s296
      %s298 = sshll.u32 %s6, 4
      %s299 = int_to_ptr.hbm [resolvable:$true] %s298
      %301 = dma.vmem_to_hbm [thread:$0]  %s297, 32, %s299, [#allocation4]
    $region45: #{tpu_custom_call.1} parent=1 // pred_fallthru
      _
    // Predicated region
    $region46: #{tpu_custom_call.1} parent=1 // pred_check
      _
    $region47: #{tpu_custom_call.1} parent=1 // pred_check_branch
      %303 = sbr.rel (0) target = $region49
    $region48: #{tpu_custom_call.1} parent=1 // pred_region
      %305 = dma.done [#allocation4], 32
    $region49: #{tpu_custom_call.1} parent=1 // pred_fallthru
      _
    %306 = vsyncpa [#allocation3], 1
    %307 = vsyncpa [#allocation6], 1
    %308 = vsyncpa [#allocation9], 1
    %309 = vsyncpa [#allocation4], 1

</llo_original>
